<compile_context>
chip_gen: v7x
topology: tpu7x:2x2x1
jax: 0.10.0
libtpu: 0.0.40
codegen_flags: <defaults>
</compile_context>

<pallas_src>
import functools

import jax
import jax.numpy as jnp
from jax.experimental import pallas as pl
from jax.experimental.pallas import tpu as pltpu

LEAKY_SLOPE = 0.01            # torch.nn.LeakyReLU default
BN_EPS = 1e-5                 # torch.nn.BatchNorm1d default
LANE = 128
SUBLANE = 8
MAX_BATCH_TILE = 2048         # big tiles amortize per-grid-step overhead (v5e/v6e)
SPLIT_BATCH_THRESHOLD = 64    # above this, force >=2 tiles (v7x has 2 TensorCores)
OUT_DTYPE = jnp.bfloat16      # halve output writeback traffic


def _round_up(x, m):
    return (x + m - 1) // m * m


def _leaky_relu(x):
    return jnp.where(x >= 0, x, LEAKY_SLOPE * x)


def _vmem_capacity_bytes():
    try:
        return int(pltpu.get_tpu_info().vmem_capacity_bytes)
    except Exception:
        return 64 << 20   # v7x per-TC capacity: safe lower bound across v5e/v6e/v7x


# ----------------------------------------------------------------------------
# Kernel: 4 chained matmuls on one batch tile; weights/biases stay resident.
# ----------------------------------------------------------------------------
def fnn_kernel(
    x_ref,
    w1_ref, b1_ref,
    w2_ref, b2_ref,
    w3_ref, b3_ref,
    w4_ref, b4_ref,
    out_ref,
):
    # fc1 + folded BN + LeakyReLU (Dropout = identity in eval mode)
    h = jnp.dot(x_ref[...], w1_ref[...], preferred_element_type=jnp.float32)
    h = _leaky_relu(h + b1_ref[...]).astype(jnp.bfloat16)

    # fc2 + folded BN + LeakyReLU
    h = jnp.dot(h, w2_ref[...], preferred_element_type=jnp.float32)
    h = _leaky_relu(h + b2_ref[...]).astype(jnp.bfloat16)

    # fc3 + folded BN + LeakyReLU
    h = jnp.dot(h, w3_ref[...], preferred_element_type=jnp.float32)
    h = _leaky_relu(h + b3_ref[...]).astype(jnp.bfloat16)

    # fc4: plain Linear
    out = jnp.dot(h, w4_ref[...], preferred_element_type=jnp.float32) + b4_ref[...]
    out_ref[...] = out.astype(out_ref.dtype)


# ----------------------------------------------------------------------------
# Input prep: do the pad + bf16 cast ONCE (not inside every forward call).
# ----------------------------------------------------------------------------
def prepare_input(x, input_dim_padded):
    B, di = x.shape
    x = x.astype(jnp.bfloat16)
    if di < input_dim_padded:
        x = jnp.pad(x, ((0, 0), (0, input_dim_padded - di)))
    return x


# ----------------------------------------------------------------------------
# Wrapper: batch-tiled grid, weights held VMEM-resident (single-buffered).
# ----------------------------------------------------------------------------
@functools.partial(jax.jit, static_argnames=("out_dim", "slice_output"))
def fnn_forward(x_p, params, out_dim, slice_output=True):
    B, di_p = x_p.shape
    dh_p = params["w1"].shape[1]
    do_p = params["w4"].shape[1]

    operands_wb = (
        params["w1"], params["b1"],
        params["w2"], params["b2"],
        params["w3"], params["b3"],
        params["w4"], params["b4"],
    )
    weight_bytes = sum(int(op.size) * op.dtype.itemsize for op in operands_wb)
    out_isize = jnp.dtype(OUT_DTYPE).itemsize

    vmem_cap = _vmem_capacity_bytes()
    # TODO(synk): if weight_bytes > ~0.75*vmem_cap (hidden_dim_p >= ~4K on v7x),
    # add a fallback path that tiles the hidden dim of fc2/fc3 with an f32 VMEM
    # accumulator (pl.when init/finalize) instead of keeping all weights resident.

    # --- batch tile: fill VMEM budget, cap, and split for v7x megacore -------
    per_row_bytes = 2 * di_p * 2 + 2 * do_p * out_isize + 3 * dh_p * 4
    act_budget = max(int(0.75 * vmem_cap) - weight_bytes, 64 * 1024)
    tb = min(MAX_BATCH_TILE,
             max(SUBLANE, act_budget // per_row_bytes // SUBLANE * SUBLANE))
    if B > SPLIT_BATCH_THRESHOLD:
        # guarantee >=2 tiles so the parallel axis shards across both v7x TCs
        tb = min(tb, _round_up(pl.cdiv(B, 2), SUBLANE))
    tb = min(tb, _round_up(B, SUBLANE))
    Bp = _round_up(B, tb)
    n_tiles = Bp // tb

    if Bp != B:
        # only the batch dim ever needs padding here (feature dim padded once
        # in prepare_input); no-op when B is already a tile multiple.
        x_p = jnp.pad(x_p, ((0, Bp - B), (0, 0)))

    # --- explicit VMEM budget (weights single-buffered, x/out double) --------
    x_tile_bytes = 2 * tb * di_p * 2
    out_tile_bytes = 2 * tb * do_p * out_isize
    interm_bytes = 3 * tb * dh_p * 4          # f32 intermediates inside body
    vmem_needed = weight_bytes + x_tile_bytes + out_tile_bytes + interm_bytes
    vmem_limit = int(min(max(32 << 20, int(vmem_needed * 1.25)),
                         int(vmem_cap * 0.9)))

    # --- specs ----------------------------------------------------------------
    x_spec = pl.BlockSpec((tb, di_p), lambda i: (i, 0))
    out_spec = pl.BlockSpec((tb, do_p), lambda i: (i, 0))

    def _resident(shape):
        # constant index_map -> block stays in VMEM across all grid steps;
        # Buffered(1) avoids paying 2x VMEM for an operand that never changes.
        return pl.BlockSpec(shape, lambda i: tuple(0 for _ in shape),
                            pipeline_mode=pl.Buffered(1))

    in_specs = [x_spec] + [_resident(op.shape) for op in operands_wb]

    flops = 2 * Bp * (di_p * dh_p + 2 * dh_p * dh_p + dh_p * do_p)
    bytes_accessed = Bp * di_p * 2 + weight_bytes + Bp * do_p * out_isize

    out_padded = pl.pallas_call(
        fnn_kernel,
        out_shape=jax.ShapeDtypeStruct((Bp, do_p), OUT_DTYPE),
        grid=(n_tiles,),
        in_specs=in_specs,
        out_specs=out_spec,
        compiler_params=pltpu.CompilerParams(
            dimension_semantics=("parallel",),
            vmem_limit_bytes=vmem_limit),
        cost_estimate=pl.CostEstimate(
            flops=flops, transcendentals=0, bytes_accessed=bytes_accessed),
    )(x_p, *operands_wb)

    if slice_output:
        return out_padded[:B, :out_dim]
    return out_padded   # consumer can take the lane-padded slab and skip a copy


# ----------------------------------------------------------------------------
# Parameter prep: torch-shaped init, BN folded into W/b, padded + bf16 weights.
# ----------------------------------------------------------------------------
def init_params(key, input_dim, hidden_dim, output_dim):
    ks = jax.random.split(key, 8)

    def linear(kw, kb, fan_in, fan_out):
        bound = 1.0 / jnp.sqrt(fan_in)
        # stored as (in, out) == torch weight (out, in) transposed
        w = jax.random.uniform(kw, (fan_in, fan_out), jnp.float32, -bound, bound)
        b = jax.random.uniform(kb, (1, fan_out), jnp.float32, -bound, bound)
        return w, b

    w1, b1 = linear(ks[0], ks[1], input_dim, hidden_dim)
    w2, b2 = linear(ks[2], ks[3], hidden_dim, hidden_dim)
    w3, b3 = linear(ks[4], ks[5], hidden_dim, hidden_dim)
    w4, b4 = linear(ks[6], ks[7], hidden_dim, output_dim)

    # BatchNorm1d fresh-init buffers: gamma=1, beta=0, mean=0, var=1 (eval mode).
    # For a trained checkpoint, pass its running_mean/var and affine params here.
    def bn_fold(w, b, hdim):
        gamma = jnp.ones((1, hdim), jnp.float32)
        beta = jnp.zeros((1, hdim), jnp.float32)
        mean = jnp.zeros((1, hdim), jnp.float32)
        var = jnp.ones((1, hdim), jnp.float32)
        scale = gamma * jax.lax.rsqrt(var + BN_EPS)
        shift = beta - mean * scale
        # (x @ w + b) * scale + shift == x @ (w * scale) + (b * scale + shift)
        return w * scale, b * scale + shift

    w1f, b1f = bn_fold(w1, b1, hidden_dim)
    w2f, b2f = bn_fold(w2, b2, hidden_dim)
    w3f, b3f = bn_fold(w3, b3, hidden_dim)

    # reference params (unpadded, f32)
    ref = dict(w1=w1f, b1=b1f, w2=w2f, b2=b2f, w3=w3f, b3=b3f, w4=w4, b4=b4)

    # padded kernel params: weights bf16, biases f32, all lane-aligned
    di_p = _round_up(input_dim, LANE)
    dh_p = _round_up(hidden_dim, LANE)
    do_p = _round_up(output_dim, LANE)

    def pad_w(w, rp, cp):
        out = jnp.zeros((rp, cp), jnp.float32).at[:w.shape[0], :w.shape[1]].set(w)
        return out.astype(jnp.bfloat16)

    def pad_b(b, cp):
        return jnp.zeros((1, cp), jnp.float32).at[:, :b.shape[1]].set(b)

    kernel_params = dict(
        w1=pad_w(w1f, di_p, dh_p), b1=pad_b(b1f, dh_p),
        w2=pad_w(w2f, dh_p, dh_p), b2=pad_b(b2f, dh_p),
        w3=pad_w(w3f, dh_p, dh_p), b3=pad_b(b3f, dh_p),
        w4=pad_w(w4, dh_p, do_p), b4=pad_b(b4, do_p),
    )
    # TODO(synk): training-mode dropout / batch-statistic BN would need
    # pltpu.prng_random_bits + a batch reduction; eval-mode forward only here.
    return kernel_params, ref


def reference_forward(x, p):
    """Pure-JAX f32 reference of the same eval-mode forward."""
    h = _leaky_relu(x @ p["w1"] + p["b1"])
    h = _leaky_relu(h @ p["w2"] + p["b2"])
    h = _leaky_relu(h @ p["w3"] + p["b3"])
    return h @ p["w4"] + p["b4"]


if __name__ == "__main__":
    key = jax.random.PRNGKey(0)
    k_x, k_p = jax.random.split(key)

    batch, input_dim, hidden_dim, output_dim = 8, 16, 32, 4
    x = jax.random.normal(k_x, (batch, input_dim), jnp.float32)
    kernel_params, ref_params = init_params(k_p, input_dim, hidden_dim, output_dim)

    # one-time input prep (pad feature dim to lanes, cast to bf16)
    x_prep = prepare_input(x, kernel_params["w1"].shape[0])

    out = fnn_forward(x_prep, kernel_params, out_dim=output_dim)
    out = jax.block_until_ready(out)

    ref = reference_forward(x, ref_params)
    assert out.shape == (batch, output_dim)
    # bf16 matmul inputs + bf16 output -> looser tolerance vs the f32 reference
    assert jnp.allclose(out.astype(jnp.float32), ref, atol=5e-2, rtol=5e-2), \
        "mismatch vs reference"

    print("KERNEL_OK")
</pallas_src>

<mosaic_0001>
module attributes {stable_mosaic.version = 11 : i64} {
  func.func @fnn_kernel(%arg0: i32, %arg1: memref<8x128xbf16, #tpu.memory_space<vmem>>, %arg2: memref<128x128xbf16, #tpu.memory_space<vmem>>, %arg3: memref<1x128xf32, #tpu.memory_space<vmem>>, %arg4: memref<128x128xbf16, #tpu.memory_space<vmem>>, %arg5: memref<1x128xf32, #tpu.memory_space<vmem>>, %arg6: memref<128x128xbf16, #tpu.memory_space<vmem>>, %arg7: memref<1x128xf32, #tpu.memory_space<vmem>>, %arg8: memref<128x128xbf16, #tpu.memory_space<vmem>>, %arg9: memref<1x128xf32, #tpu.memory_space<vmem>>, %arg10: memref<8x128xbf16, #tpu.memory_space<vmem>>) attributes {dimension_semantics = [#tpu.dimension_semantics<parallel>], iteration_bounds = array<i64: 1>, scalar_prefetch = 0 : i64, scratch_operands = 0 : i64, tpu.core_type = #tpu.core_type<tc>, window_params = [{transform_indices = @transform_0, window_bounds = array<i64: 8, 128>}, {pipeline_mode = #tpu.pipeline_mode<synchronous>, transform_indices = @transform_1, window_bounds = array<i64: 128, 128>}, {pipeline_mode = #tpu.pipeline_mode<synchronous>, transform_indices = @transform_2, window_bounds = array<i64: 1, 128>}, {pipeline_mode = #tpu.pipeline_mode<synchronous>, transform_indices = @transform_3, window_bounds = array<i64: 128, 128>}, {pipeline_mode = #tpu.pipeline_mode<synchronous>, transform_indices = @transform_4, window_bounds = array<i64: 1, 128>}, {pipeline_mode = #tpu.pipeline_mode<synchronous>, transform_indices = @transform_5, window_bounds = array<i64: 128, 128>}, {pipeline_mode = #tpu.pipeline_mode<synchronous>, transform_indices = @transform_6, window_bounds = array<i64: 1, 128>}, {pipeline_mode = #tpu.pipeline_mode<synchronous>, transform_indices = @transform_7, window_bounds = array<i64: 128, 128>}, {pipeline_mode = #tpu.pipeline_mode<synchronous>, transform_indices = @transform_8, window_bounds = array<i64: 1, 128>}, {transform_indices = @transform_9, window_bounds = array<i64: 8, 128>}]} {
    %c0 = arith.constant 0 : index
    %c0_0 = arith.constant 0 : index
    %0 = vector.load %arg1[%c0, %c0_0] : memref<8x128xbf16, #tpu.memory_space<vmem>>, vector<8x128xbf16>
    %c0_1 = arith.constant 0 : index
    %c0_2 = arith.constant 0 : index
    %1 = vector.load %arg2[%c0_1, %c0_2] : memref<128x128xbf16, #tpu.memory_space<vmem>>, vector<128x128xbf16>
    %cst = arith.constant dense<0.000000e+00> : vector<8x128xf32>
    %2 = tpu.matmul %0, %1, %cst {dimension_numbers = #tpu.dot_dimension_numbers<[1], [0], [0], [1], [0, 0, 1, 1], [], []>} : vector<8x128xbf16>, vector<128x128xbf16>, vector<8x128xf32> -> vector<8x128xf32>
    %c0_3 = arith.constant 0 : index
    %c0_4 = arith.constant 0 : index
    %3 = vector.load %arg3[%c0_3, %c0_4] : memref<1x128xf32, #tpu.memory_space<vmem>>, vector<1x128xf32>
    %4 = vector.broadcast %3 : vector<1x128xf32> to vector<8x128xf32>
    %5 = arith.addf %2, %4 : vector<8x128xf32>
    %cst_5 = arith.constant 0.000000e+00 : f32
    %6 = vector.broadcast %cst_5 : f32 to vector<8x128xf32>
    %7 = arith.cmpf oge, %5, %6 : vector<8x128xf32>
    %cst_6 = arith.constant 0.00999999977 : f32
    %8 = vector.broadcast %cst_6 : f32 to vector<8x128xf32>
    %9 = arith.mulf %8, %5 : vector<8x128xf32>
    %10 = arith.select %7, %5, %9 : vector<8x128xi1>, vector<8x128xf32>
    %11 = arith.truncf %10 : vector<8x128xf32> to vector<8x128xbf16>
    %c0_7 = arith.constant 0 : index
    %c0_8 = arith.constant 0 : index
    %12 = vector.load %arg4[%c0_7, %c0_8] : memref<128x128xbf16, #tpu.memory_space<vmem>>, vector<128x128xbf16>
    %cst_9 = arith.constant dense<0.000000e+00> : vector<8x128xf32>
    %13 = tpu.matmul %11, %12, %cst_9 {dimension_numbers = #tpu.dot_dimension_numbers<[1], [0], [0], [1], [0, 0, 1, 1], [], []>} : vector<8x128xbf16>, vector<128x128xbf16>, vector<8x128xf32> -> vector<8x128xf32>
    %c0_10 = arith.constant 0 : index
    %c0_11 = arith.constant 0 : index
    %14 = vector.load %arg5[%c0_10, %c0_11] : memref<1x128xf32, #tpu.memory_space<vmem>>, vector<1x128xf32>
    %15 = vector.broadcast %14 : vector<1x128xf32> to vector<8x128xf32>
    %16 = arith.addf %13, %15 : vector<8x128xf32>
    %cst_12 = arith.constant 0.000000e+00 : f32
    %17 = vector.broadcast %cst_12 : f32 to vector<8x128xf32>
    %18 = arith.cmpf oge, %16, %17 : vector<8x128xf32>
    %cst_13 = arith.constant 0.00999999977 : f32
    %19 = vector.broadcast %cst_13 : f32 to vector<8x128xf32>
    %20 = arith.mulf %19, %16 : vector<8x128xf32>
    %21 = arith.select %18, %16, %20 : vector<8x128xi1>, vector<8x128xf32>
    %22 = arith.truncf %21 : vector<8x128xf32> to vector<8x128xbf16>
    %c0_14 = arith.constant 0 : index
    %c0_15 = arith.constant 0 : index
    %23 = vector.load %arg6[%c0_14, %c0_15] : memref<128x128xbf16, #tpu.memory_space<vmem>>, vector<128x128xbf16>
    %cst_16 = arith.constant dense<0.000000e+00> : vector<8x128xf32>
    %24 = tpu.matmul %22, %23, %cst_16 {dimension_numbers = #tpu.dot_dimension_numbers<[1], [0], [0], [1], [0, 0, 1, 1], [], []>} : vector<8x128xbf16>, vector<128x128xbf16>, vector<8x128xf32> -> vector<8x128xf32>
    %c0_17 = arith.constant 0 : index
    %c0_18 = arith.constant 0 : index
    %25 = vector.load %arg7[%c0_17, %c0_18] : memref<1x128xf32, #tpu.memory_space<vmem>>, vector<1x128xf32>
    %26 = vector.broadcast %25 : vector<1x128xf32> to vector<8x128xf32>
    %27 = arith.addf %24, %26 : vector<8x128xf32>
    %cst_19 = arith.constant 0.000000e+00 : f32
    %28 = vector.broadcast %cst_19 : f32 to vector<8x128xf32>
    %29 = arith.cmpf oge, %27, %28 : vector<8x128xf32>
    %cst_20 = arith.constant 0.00999999977 : f32
    %30 = vector.broadcast %cst_20 : f32 to vector<8x128xf32>
    %31 = arith.mulf %30, %27 : vector<8x128xf32>
    %32 = arith.select %29, %27, %31 : vector<8x128xi1>, vector<8x128xf32>
    %33 = arith.truncf %32 : vector<8x128xf32> to vector<8x128xbf16>
    %c0_21 = arith.constant 0 : index
    %c0_22 = arith.constant 0 : index
    %34 = vector.load %arg8[%c0_21, %c0_22] : memref<128x128xbf16, #tpu.memory_space<vmem>>, vector<128x128xbf16>
    %cst_23 = arith.constant dense<0.000000e+00> : vector<8x128xf32>
    %35 = tpu.matmul %33, %34, %cst_23 {dimension_numbers = #tpu.dot_dimension_numbers<[1], [0], [0], [1], [0, 0, 1, 1], [], []>} : vector<8x128xbf16>, vector<128x128xbf16>, vector<8x128xf32> -> vector<8x128xf32>
    %c0_24 = arith.constant 0 : index
    %c0_25 = arith.constant 0 : index
    %36 = vector.load %arg9[%c0_24, %c0_25] : memref<1x128xf32, #tpu.memory_space<vmem>>, vector<1x128xf32>
    %37 = vector.broadcast %36 : vector<1x128xf32> to vector<8x128xf32>
    %38 = arith.addf %35, %37 : vector<8x128xf32>
    %39 = arith.truncf %38 : vector<8x128xf32> to vector<8x128xbf16>
    %c0_26 = arith.constant 0 : index
    %c0_27 = arith.constant 0 : index
    %40 = vector.load %arg10[%c0_26, %c0_27] : memref<8x128xbf16, #tpu.memory_space<vmem>>, vector<8x128xbf16>
    tpu.vector_store %arg10[%c0_26, %c0_27], %39 {strides = array<i32>} : memref<8x128xbf16, #tpu.memory_space<vmem>>, vector<8x128xbf16>,
    return
  }
  func.func @transform_0(%arg0: i32) -> (i32, i32) {
    %c0_i32 = arith.constant 0 : i32
    %c0_i32_0 = arith.constant 0 : i32
    return %arg0, %c0_i32 : i32, i32
  }
  func.func @transform_1(%arg0: i32) -> (i32, i32) {
    %c0_i32 = arith.constant 0 : i32
    %c0_i32_0 = arith.constant 0 : i32
    %c0_i32_1 = arith.constant 0 : i32
    return %c0_i32, %c0_i32_0 : i32, i32
  }
  func.func @transform_2(%arg0: i32) -> (i32, i32) {
    %c0_i32 = arith.constant 0 : i32
    %c0_i32_0 = arith.constant 0 : i32
    %c0_i32_1 = arith.constant 0 : i32
    return %c0_i32, %c0_i32_0 : i32, i32
  }
  func.func @transform_3(%arg0: i32) -> (i32, i32) {
    %c0_i32 = arith.constant 0 : i32
    %c0_i32_0 = arith.constant 0 : i32
    %c0_i32_1 = arith.constant 0 : i32
    return %c0_i32, %c0_i32_0 : i32, i32
  }
  func.func @transform_4(%arg0: i32) -> (i32, i32) {
    %c0_i32 = arith.constant 0 : i32
    %c0_i32_0 = arith.constant 0 : i32
    %c0_i32_1 = arith.constant 0 : i32
    return %c0_i32, %c0_i32_0 : i32, i32
  }
  func.func @transform_5(%arg0: i32) -> (i32, i32) {
    %c0_i32 = arith.constant 0 : i32
    %c0_i32_0 = arith.constant 0 : i32
    %c0_i32_1 = arith.constant 0 : i32
    return %c0_i32, %c0_i32_0 : i32, i32
  }
  func.func @transform_6(%arg0: i32) -> (i32, i32) {
    %c0_i32 = arith.constant 0 : i32
    %c0_i32_0 = arith.constant 0 : i32
    %c0_i32_1 = arith.constant 0 : i32
    return %c0_i32, %c0_i32_0 : i32, i32
  }
  func.func @transform_7(%arg0: i32) -> (i32, i32) {
    %c0_i32 = arith.constant 0 : i32
    %c0_i32_0 = arith.constant 0 : i32
    %c0_i32_1 = arith.constant 0 : i32
    return %c0_i32, %c0_i32_0 : i32, i32
  }
  func.func @transform_8(%arg0: i32) -> (i32, i32) {
    %c0_i32 = arith.constant 0 : i32
    %c0_i32_0 = arith.constant 0 : i32
    %c0_i32_1 = arith.constant 0 : i32
    return %c0_i32, %c0_i32_0 : i32, i32
  }
  func.func @transform_9(%arg0: i32) -> (i32, i32) {
    %c0_i32 = arith.constant 0 : i32
    %c0_i32_0 = arith.constant 0 : i32
    return %arg0, %c0_i32 : i32, i32
  }
}

</mosaic_0001>

<llo_original>
// kernel: fnn_forward.1
$region0: #{fnn_forward.1}
  #allocation0 [shape = 'u32[]', space=smem, size = 0x4, offset = 0x4, fixed_abs, tag = 'smem constant byte address 0x4 - core index']
  #allocation1 [shape = 'u32[144,128]{1,0:T(1,128)}', space=vmem, size = 0x12000, scoped, tag = 'internal scratch']
  %s0 = inlined_call_operand.hbm [shape: bf16[8,128], index: 0, kind: input, shape index: {}]
  %s1 = inlined_call_operand.hbm [shape: bf16[128,128], index: 1, kind: input, shape index: {}]
  %s2 = inlined_call_operand.vmem [shape: f32[1,128], index: 2, kind: input, shape index: {}]
  %s3 = inlined_call_operand.hbm [shape: bf16[128,128], index: 3, kind: input, shape index: {}]
  %s4 = inlined_call_operand.vmem [shape: f32[1,128], index: 4, kind: input, shape index: {}]
  %s5 = inlined_call_operand.hbm [shape: bf16[128,128], index: 5, kind: input, shape index: {}]
  %s6 = inlined_call_operand.vmem [shape: f32[1,128], index: 6, kind: input, shape index: {}]
  %s7 = inlined_call_operand.hbm [shape: bf16[128,128], index: 7, kind: input, shape index: {}]
  %s8 = inlined_call_operand.vmem [shape: f32[1,128], index: 8, kind: input, shape index: {}]
  %s9 = inlined_call_operand.vmem [shape: bf16[8,128], index: 9, kind: output, shape index: {}]
  %s10 = sld [smem:[#allocation0]]
  $region66: #{fnn_forward.1} parent=0
    _
  %s12 = ssub.s32 1, %s10
  %s13 = scalar_select 0, %s12, %s10
  $region1: #{fnn_forward.1} parent=0
    #allocation2 [shape = 'u8[2048]{0}', space=vmem, size = 0x800, scoped, tag = 'input window, operand 0, single buffered']
    #allocation3 [shape = 's32[1]{0}', space=sflag, size = 0x4, scoped, tag = 'scoped memory for fnn_forward.1']
    #allocation4 [shape = 'u8[32768]{0}', space=vmem, size = 0x8000, scoped, tag = 'input window, operand 1, single buffered']
    #allocation5 [shape = 's32[1]{0}', space=sflag, size = 0x4, scoped, tag = 'scoped memory for fnn_forward.1']
    #allocation6 [shape = 'u8[32768]{0}', space=vmem, size = 0x8000, scoped, tag = 'input window, operand 3, single buffered']
    #allocation7 [shape = 'u8[32768]{0}', space=vmem, size = 0x8000, scoped, tag = 'input window, operand 5, single buffered']
    #allocation8 [shape = 's32[1]{0}', space=sflag, size = 0x4, scoped, tag = 'scoped memory for fnn_forward.1']
    #allocation9 [shape = 'u8[32768]{0}', space=vmem, size = 0x8000, scoped, tag = 'input window, operand 7, single buffered']
    %14 = vsyncpa [#allocation3], 0
    %15 = vsyncpa [#allocation5], 0
    %16 = vsyncpa [#allocation8], 0
    // Predicated region
    $region2: #{fnn_forward.1} parent=1 // pred_check
      _
    $region3: #{fnn_forward.1} parent=1 // pred_check_branch
      %18 = sbr.rel (0) target = $region5
    $region4: #{fnn_forward.1} parent=1 // pred_region
      %s20 = ssub.s32 64, 64
      %21 = vsyncadd [#allocation3], %s20
      %s23 = sshll.u32 [#allocation2], 4
      %s24 = int_to_ptr.vmem [resolvable:$true] %s23
      %26 = dma.hbm_to_vmem [thread:$0]  %s0, 64, %s24, [#allocation3]
    $region5: #{fnn_forward.1} parent=1 // pred_fallthru
      _
    // Predicated region
    $region6: #{fnn_forward.1} parent=1 // pred_check
      _
    $region7: #{fnn_forward.1} parent=1 // pred_check_branch
      %28 = sbr.rel (0) target = $region9
    $region8: #{fnn_forward.1} parent=1 // pred_region
      %s30 = ssub.s32 1024, 1024
      %31 = vsyncadd [#allocation5], %s30
      %s32 = sshll.u32 [#allocation4], 4
      %s33 = int_to_ptr.vmem [resolvable:$true] %s32
      %38 = dma.hbm_to_vmem [thread:$0]  %s1, 1024, %s33, [#allocation5], 64, 64, 4
    $region9: #{fnn_forward.1} parent=1 // pred_fallthru
      _
    // Predicated region
    $region10: #{fnn_forward.1} parent=1 // pred_check
      _
    $region11: #{fnn_forward.1} parent=1 // pred_check_branch
      %40 = sbr.rel (0) target = $region13
    $region12: #{fnn_forward.1} parent=1 // pred_region
      _
    $region13: #{fnn_forward.1} parent=1 // pred_fallthru
      _
    // Predicated region
    $region14: #{fnn_forward.1} parent=1 // pred_check
      _
    $region15: #{fnn_forward.1} parent=1 // pred_check_branch
      %42 = sbr.rel (0) target = $region17
    $region16: #{fnn_forward.1} parent=1 // pred_region
      %s44 = ssub.s32 1024, 1024
      %45 = vsyncadd [#allocation5], %s44
      %s46 = sshll.u32 [#allocation6], 4
      %s47 = int_to_ptr.vmem [resolvable:$true] %s46
      %52 = dma.hbm_to_vmem [thread:$0]  %s3, 1024, %s47, [#allocation5], 64, 64, 4
    $region17: #{fnn_forward.1} parent=1 // pred_fallthru
      _
    // Predicated region
    $region18: #{fnn_forward.1} parent=1 // pred_check
      _
    $region19: #{fnn_forward.1} parent=1 // pred_check_branch
      %54 = sbr.rel (0) target = $region21
    $region20: #{fnn_forward.1} parent=1 // pred_region
      _
    $region21: #{fnn_forward.1} parent=1 // pred_fallthru
      _
    // Predicated region
    $region22: #{fnn_forward.1} parent=1 // pred_check
      _
    $region23: #{fnn_forward.1} parent=1 // pred_check_branch
      %56 = sbr.rel (0) target = $region25
    $region24: #{fnn_forward.1} parent=1 // pred_region
      %s58 = ssub.s32 1024, 1024
      %59 = vsyncadd [#allocation8], %s58
      %s60 = sshll.u32 [#allocation7], 4
      %s61 = int_to_ptr.vmem [resolvable:$true] %s60
      %66 = dma.hbm_to_vmem [thread:$0]  %s5, 1024, %s61, [#allocation8], 64, 64, 4
    $region25: #{fnn_forward.1} parent=1 // pred_fallthru
      _
    // Predicated region
    $region26: #{fnn_forward.1} parent=1 // pred_check
      _
    $region27: #{fnn_forward.1} parent=1 // pred_check_branch
      %68 = sbr.rel (0) target = $region29
    $region28: #{fnn_forward.1} parent=1 // pred_region
      _
    $region29: #{fnn_forward.1} parent=1 // pred_fallthru
      _
    // Predicated region
    $region30: #{fnn_forward.1} parent=1 // pred_check
      _
    $region31: #{fnn_forward.1} parent=1 // pred_check_branch
      %70 = sbr.rel (0) target = $region33
    $region32: #{fnn_forward.1} parent=1 // pred_region
      %s72 = ssub.s32 1024, 1024
      %73 = vsyncadd [#allocation8], %s72
      %s74 = sshll.u32 [#allocation9], 4
      %s75 = int_to_ptr.vmem [resolvable:$true] %s74
      %80 = dma.hbm_to_vmem [thread:$0]  %s7, 1024, %s75, [#allocation8], 64, 64, 4
    $region33: #{fnn_forward.1} parent=1 // pred_fallthru
      _
    // Predicated region
    $region34: #{fnn_forward.1} parent=1 // pred_check
      _
    $region35: #{fnn_forward.1} parent=1 // pred_check_branch
      %82 = sbr.rel (0) target = $region37
    $region36: #{fnn_forward.1} parent=1 // pred_region
      _
    $region37: #{fnn_forward.1} parent=1 // pred_fallthru
      _
    // Predicated region
    $region38: #{fnn_forward.1} parent=1 // pred_check
      _
    $region39: #{fnn_forward.1} parent=1 // pred_check_branch
      %84 = sbr.rel (0) target = $region41
    $region40: #{fnn_forward.1} parent=1 // pred_region
      %85 = dma.done [#allocation3], 64
    $region41: #{fnn_forward.1} parent=1 // pred_fallthru
      _
    // Predicated region
    $region42: #{fnn_forward.1} parent=1 // pred_check
      _
    $region43: #{fnn_forward.1} parent=1 // pred_check_branch
      %87 = sbr.rel (0) target = $region45
    $region44: #{fnn_forward.1} parent=1 // pred_region
      %88 = dma.done [#allocation5], 1024
    $region45: #{fnn_forward.1} parent=1 // pred_fallthru
      _
    // Predicated region
    $region46: #{fnn_forward.1} parent=1 // pred_check
      _
    $region47: #{fnn_forward.1} parent=1 // pred_check_branch
      %90 = sbr.rel (0) target = $region49
    $region48: #{fnn_forward.1} parent=1 // pred_region
      %91 = dma.done [#allocation5], 1024
    $region49: #{fnn_forward.1} parent=1 // pred_fallthru
      _
    // Predicated region
    $region50: #{fnn_forward.1} parent=1 // pred_check
      _
    $region51: #{fnn_forward.1} parent=1 // pred_check_branch
      %93 = sbr.rel (0) target = $region53
    $region52: #{fnn_forward.1} parent=1 // pred_region
      %94 = dma.done [#allocation8], 1024
    $region53: #{fnn_forward.1} parent=1 // pred_fallthru
      _
    // Predicated region
    $region54: #{fnn_forward.1} parent=1 // pred_check
      _
    $region55: #{fnn_forward.1} parent=1 // pred_check_branch
      %96 = sbr.rel (0) target = $region57
    $region56: #{fnn_forward.1} parent=1 // pred_region
      %97 = dma.done [#allocation8], 1024
    $region57: #{fnn_forward.1} parent=1 // pred_fallthru
      _
    %v99 = vld [vmem:[#allocation2] sm:$0xf]
    %v100 = vld [vmem:[#allocation4] sm:$0xf]
    %v101 = vld [vmem:[#allocation4 + $0x4] sm:$0xf]
    %v102 = vld [vmem:[#allocation4 + $0x8] sm:$0xf]
    %v103 = vld [vmem:[#allocation4 + $0xc] sm:$0xf]
    %v104 = vld [vmem:[#allocation4 + $0x10] sm:$0xf]
    %v105 = vld [vmem:[#allocation4 + $0x14] sm:$0xf]
    %v106 = vld [vmem:[#allocation4 + $0x18] sm:$0xf]
    %v107 = vld [vmem:[#allocation4 + $0x1c] sm:$0xf]
    %v108 = vld [vmem:[#allocation4 + $0x20] sm:$0xf]
    %v109 = vld [vmem:[#allocation4 + $0x24] sm:$0xf]
    %v110 = vld [vmem:[#allocation4 + $0x28] sm:$0xf]
    %v111 = vld [vmem:[#allocation4 + $0x2c] sm:$0xf]
    %v112 = vld [vmem:[#allocation4 + $0x30] sm:$0xf]
    %v113 = vld [vmem:[#allocation4 + $0x34] sm:$0xf]
    %v114 = vld [vmem:[#allocation4 + $0x38] sm:$0xf]
    %v115 = vld [vmem:[#allocation4 + $0x3c] sm:$0xf]
    %v116 = vld [vmem:[%s2] sm:$0x1]
    %v118 = vlaneseq
    %v119 = vshrl.u32 %v118, 7
    %v120 = vsub.s32 0, %v119
    %v121 = vrot.slane %v116, %v120
    %v139 = vunpack.c.l.b16 %v100
    %v140 = vunpack.c.l.b16 %v101
    %v141 = vunpack.c.l.b16 %v102
    %v142 = vunpack.c.l.b16 %v103
    %v143 = vunpack.c.l.b16 %v104
    %v144 = vunpack.c.l.b16 %v105
    %v145 = vunpack.c.l.b16 %v106
    %v146 = vunpack.c.l.b16 %v107
    %v147 = vunpack.c.l.b16 %v108
    %v148 = vunpack.c.l.b16 %v109
    %v149 = vunpack.c.l.b16 %v110
    %v150 = vunpack.c.l.b16 %v111
    %v151 = vunpack.c.l.b16 %v112
    %v152 = vunpack.c.l.b16 %v113
    %v153 = vunpack.c.l.b16 %v114
    %v154 = vunpack.c.l.b16 %v115
    %v155 = vpack.c.b16 %v140, %v139
    %v156 = vpack.c.b16 %v142, %v141
    %v157 = vpack.c.b16 %v144, %v143
    %v158 = vpack.c.b16 %v146, %v145
    %v159 = vpack.c.b16 %v148, %v147
    %v160 = vpack.c.b16 %v150, %v149
    %v161 = vpack.c.b16 %v152, %v151
    %v162 = vpack.c.b16 %v154, %v153
    %171 = vmatprep.subr.bf16.mxu0 0
    %172 = vmatpush1.bf16.msra.mxu0 %v155
    %173 = vmatprep.subr.bf16.mxu0 0
    %174 = vmatpush1.bf16.msra.mxu0 %v156
    %175 = vmatprep.subr.bf16.mxu0 0
    %176 = vmatpush1.bf16.msra.mxu0 %v157
    %177 = vmatprep.subr.bf16.mxu0 0
    %178 = vmatpush1.bf16.msra.mxu0 %v158
    %179 = vmatprep.subr.bf16.mxu0 0
    %180 = vmatpush1.bf16.msra.mxu0 %v159
    %181 = vmatprep.subr.bf16.mxu0 0
    %182 = vmatpush1.bf16.msra.mxu0 %v160
    %183 = vmatprep.subr.bf16.mxu0 0
    %184 = vmatpush1.bf16.msra.mxu0 %v161
    %185 = vmatprep.subr.bf16.mxu0 0
    %186 = vmatpush1.bf16.msra.mxu0 %v162
    %187 = vmatprep.subr.bf16.mxu0 0
    %188 = vmatpush1.bf16.msra.mxu0 0
    %189 = vmatprep.subr.bf16.mxu0 0
    %190 = vmatpush1.bf16.msra.mxu0 0
    %191 = vmatprep.subr.bf16.mxu0 0
    %192 = vmatpush1.bf16.msra.mxu0 0
    %193 = vmatprep.subr.bf16.mxu0 0
    %194 = vmatpush1.bf16.msra.mxu0 0
    %195 = vmatprep.subr.bf16.mxu0 0
    %196 = vmatpush1.bf16.msra.mxu0 0
    %197 = vmatprep.subr.bf16.mxu0 0
    %198 = vmatpush1.bf16.msra.mxu0 0
    %199 = vmatprep.subr.bf16.mxu0 0
    %200 = vmatpush1.bf16.msra.mxu0 0
    %201 = vmatprep.subr.bf16.mxu0 0
    %202 = vmatpush1.bf16.msra.mxu0 0
    %203 = vmatprep.mubr.bf16.mxu0 0
    %204 = vmatmul.mubr.bf16.gmra.mrb[0].mxu0 %v99
    %v205 = vpop.f32.mrb[0].mxu0
    %v206 = vadd.f32 %v121, %v205
    %v207 = vpop.f32.mrb[0].mxu0
    %v208 = vpop.f32.mrb[0].mxu0
    %v209 = vpop.f32.mrb[0].mxu0
    %210 = vdwg.mxu0
    %vm211 = vcmp.ge.f32.partialorder %v206, 0.0
    %v212 = vmul.f32 %v206, 0.01
    %v213 = vsel %vm211, %v206, %v212
    %v214 = vpack.c.bf16 %v213, %v213
    %v215 = vld [vmem:[#allocation6] sm:$0xf]
    %v216 = vld [vmem:[#allocation6 + $0x4] sm:$0xf]
    %v217 = vld [vmem:[#allocation6 + $0x8] sm:$0xf]
    %v218 = vld [vmem:[#allocation6 + $0xc] sm:$0xf]
    %v219 = vld [vmem:[#allocation6 + $0x10] sm:$0xf]
    %v220 = vld [vmem:[#allocation6 + $0x14] sm:$0xf]
    %v221 = vld [vmem:[#allocation6 + $0x18] sm:$0xf]
    %v222 = vld [vmem:[#allocation6 + $0x1c] sm:$0xf]
    %v223 = vld [vmem:[#allocation6 + $0x20] sm:$0xf]
    %v224 = vld [vmem:[#allocation6 + $0x24] sm:$0xf]
    %v225 = vld [vmem:[#allocation6 + $0x28] sm:$0xf]
    %v226 = vld [vmem:[#allocation6 + $0x2c] sm:$0xf]
    %v227 = vld [vmem:[#allocation6 + $0x30] sm:$0xf]
    %v228 = vld [vmem:[#allocation6 + $0x34] sm:$0xf]
    %v229 = vld [vmem:[#allocation6 + $0x38] sm:$0xf]
    %v230 = vld [vmem:[#allocation6 + $0x3c] sm:$0xf]
    %v231 = vld [vmem:[%s4] sm:$0x1]
    %v233 = vlaneseq
    %v234 = vshrl.u32 %v233, 7
    %v235 = vsub.s32 0, %v234
    %v236 = vrot.slane %v231, %v235
    %v254 = vunpack.c.l.b16 %v215
    %v255 = vunpack.c.l.b16 %v216
    %v256 = vunpack.c.l.b16 %v217
    %v257 = vunpack.c.l.b16 %v218
    %v258 = vunpack.c.l.b16 %v219
    %v259 = vunpack.c.l.b16 %v220
    %v260 = vunpack.c.l.b16 %v221
    %v261 = vunpack.c.l.b16 %v222
    %v262 = vunpack.c.l.b16 %v223
    %v263 = vunpack.c.l.b16 %v224
    %v264 = vunpack.c.l.b16 %v225
    %v265 = vunpack.c.l.b16 %v226
    %v266 = vunpack.c.l.b16 %v227
    %v267 = vunpack.c.l.b16 %v228
    %v268 = vunpack.c.l.b16 %v229
    %v269 = vunpack.c.l.b16 %v230
    %v270 = vpack.c.b16 %v255, %v254
    %v271 = vpack.c.b16 %v257, %v256
    %v272 = vpack.c.b16 %v259, %v258
    %v273 = vpack.c.b16 %v261, %v260
    %v274 = vpack.c.b16 %v263, %v262
    %v275 = vpack.c.b16 %v265, %v264
    %v276 = vpack.c.b16 %v267, %v266
    %v277 = vpack.c.b16 %v269, %v268
    %286 = vmatprep.subr.bf16.mxu0 0
    %287 = vmatpush1.bf16.msra.mxu0 %v270
    %288 = vmatprep.subr.bf16.mxu0 0
    %289 = vmatpush1.bf16.msra.mxu0 %v271
    %290 = vmatprep.subr.bf16.mxu0 0
    %291 = vmatpush1.bf16.msra.mxu0 %v272
    %292 = vmatprep.subr.bf16.mxu0 0
    %293 = vmatpush1.bf16.msra.mxu0 %v273
    %294 = vmatprep.subr.bf16.mxu0 0
    %295 = vmatpush1.bf16.msra.mxu0 %v274
    %296 = vmatprep.subr.bf16.mxu0 0
    %297 = vmatpush1.bf16.msra.mxu0 %v275
    %298 = vmatprep.subr.bf16.mxu0 0
    %299 = vmatpush1.bf16.msra.mxu0 %v276
    %300 = vmatprep.subr.bf16.mxu0 0
    %301 = vmatpush1.bf16.msra.mxu0 %v277
    %302 = vmatprep.subr.bf16.mxu0 0
    %303 = vmatpush1.bf16.msra.mxu0 0
    %304 = vmatprep.subr.bf16.mxu0 0
    %305 = vmatpush1.bf16.msra.mxu0 0
    %306 = vmatprep.subr.bf16.mxu0 0
    %307 = vmatpush1.bf16.msra.mxu0 0
    %308 = vmatprep.subr.bf16.mxu0 0
    %309 = vmatpush1.bf16.msra.mxu0 0
    %310 = vmatprep.subr.bf16.mxu0 0
    %311 = vmatpush1.bf16.msra.mxu0 0
    %312 = vmatprep.subr.bf16.mxu0 0
    %313 = vmatpush1.bf16.msra.mxu0 0
    %314 = vmatprep.subr.bf16.mxu0 0
    %315 = vmatpush1.bf16.msra.mxu0 0
    %316 = vmatprep.subr.bf16.mxu0 0
    %317 = vmatpush1.bf16.msra.mxu0 0
    %318 = vmatprep.mubr.bf16.mxu0 0
    %319 = vmatmul.mubr.bf16.gmra.mrb[0].mxu0 %v214
    %v320 = vpop.f32.mrb[0].mxu0
    %v321 = vadd.f32 %v236, %v320
    %v322 = vpop.f32.mrb[0].mxu0
    %v323 = vpop.f32.mrb[0].mxu0
    %v324 = vpop.f32.mrb[0].mxu0
    %325 = vdwg.mxu0
    %vm326 = vcmp.ge.f32.partialorder %v321, 0.0
    %v327 = vmul.f32 %v321, 0.01
    %v328 = vsel %vm326, %v321, %v327
    %v329 = vpack.c.bf16 %v328, %v328
    %v330 = vld [vmem:[#allocation7] sm:$0xf]
    %v331 = vld [vmem:[#allocation7 + $0x4] sm:$0xf]
    %v332 = vld [vmem:[#allocation7 + $0x8] sm:$0xf]
    %v333 = vld [vmem:[#allocation7 + $0xc] sm:$0xf]
    %v334 = vld [vmem:[#allocation7 + $0x10] sm:$0xf]
    %v335 = vld [vmem:[#allocation7 + $0x14] sm:$0xf]
    %v336 = vld [vmem:[#allocation7 + $0x18] sm:$0xf]
    %v337 = vld [vmem:[#allocation7 + $0x1c] sm:$0xf]
    %v338 = vld [vmem:[#allocation7 + $0x20] sm:$0xf]
    %v339 = vld [vmem:[#allocation7 + $0x24] sm:$0xf]
    %v340 = vld [vmem:[#allocation7 + $0x28] sm:$0xf]
    %v341 = vld [vmem:[#allocation7 + $0x2c] sm:$0xf]
    %v342 = vld [vmem:[#allocation7 + $0x30] sm:$0xf]
    %v343 = vld [vmem:[#allocation7 + $0x34] sm:$0xf]
    %v344 = vld [vmem:[#allocation7 + $0x38] sm:$0xf]
    %v345 = vld [vmem:[#allocation7 + $0x3c] sm:$0xf]
    %v346 = vld [vmem:[%s6] sm:$0x1]
    %v348 = vlaneseq
    %v349 = vshrl.u32 %v348, 7
    %v350 = vsub.s32 0, %v349
    %v351 = vrot.slane %v346, %v350
    %v369 = vunpack.c.l.b16 %v330
    %v370 = vunpack.c.l.b16 %v331
    %v371 = vunpack.c.l.b16 %v332
    %v372 = vunpack.c.l.b16 %v333
    %v373 = vunpack.c.l.b16 %v334
    %v374 = vunpack.c.l.b16 %v335
    %v375 = vunpack.c.l.b16 %v336
    %v376 = vunpack.c.l.b16 %v337
    %v377 = vunpack.c.l.b16 %v338
    %v378 = vunpack.c.l.b16 %v339
    %v379 = vunpack.c.l.b16 %v340
    %v380 = vunpack.c.l.b16 %v341
    %v381 = vunpack.c.l.b16 %v342
    %v382 = vunpack.c.l.b16 %v343
    %v383 = vunpack.c.l.b16 %v344
    %v384 = vunpack.c.l.b16 %v345
    %v385 = vpack.c.b16 %v370, %v369
    %v386 = vpack.c.b16 %v372, %v371
    %v387 = vpack.c.b16 %v374, %v373
    %v388 = vpack.c.b16 %v376, %v375
    %v389 = vpack.c.b16 %v378, %v377
    %v390 = vpack.c.b16 %v380, %v379
    %v391 = vpack.c.b16 %v382, %v381
    %v392 = vpack.c.b16 %v384, %v383
    %401 = vmatprep.subr.bf16.mxu0 0
    %402 = vmatpush1.bf16.msra.mxu0 %v385
    %403 = vmatprep.subr.bf16.mxu0 0
    %404 = vmatpush1.bf16.msra.mxu0 %v386
    %405 = vmatprep.subr.bf16.mxu0 0
    %406 = vmatpush1.bf16.msra.mxu0 %v387
    %407 = vmatprep.subr.bf16.mxu0 0
    %408 = vmatpush1.bf16.msra.mxu0 %v388
    %409 = vmatprep.subr.bf16.mxu0 0
    %410 = vmatpush1.bf16.msra.mxu0 %v389
    %411 = vmatprep.subr.bf16.mxu0 0
    %412 = vmatpush1.bf16.msra.mxu0 %v390
    %413 = vmatprep.subr.bf16.mxu0 0
    %414 = vmatpush1.bf16.msra.mxu0 %v391
    %415 = vmatprep.subr.bf16.mxu0 0
    %416 = vmatpush1.bf16.msra.mxu0 %v392
    %417 = vmatprep.subr.bf16.mxu0 0
    %418 = vmatpush1.bf16.msra.mxu0 0
    %419 = vmatprep.subr.bf16.mxu0 0
    %420 = vmatpush1.bf16.msra.mxu0 0
    %421 = vmatprep.subr.bf16.mxu0 0
    %422 = vmatpush1.bf16.msra.mxu0 0
    %423 = vmatprep.subr.bf16.mxu0 0
    %424 = vmatpush1.bf16.msra.mxu0 0
    %425 = vmatprep.subr.bf16.mxu0 0
    %426 = vmatpush1.bf16.msra.mxu0 0
    %427 = vmatprep.subr.bf16.mxu0 0
    %428 = vmatpush1.bf16.msra.mxu0 0
    %429 = vmatprep.subr.bf16.mxu0 0
    %430 = vmatpush1.bf16.msra.mxu0 0
    %431 = vmatprep.subr.bf16.mxu0 0
    %432 = vmatpush1.bf16.msra.mxu0 0
    %433 = vmatprep.mubr.bf16.mxu0 0
    %434 = vmatmul.mubr.bf16.gmra.mrb[0].mxu0 %v329
    %v435 = vpop.f32.mrb[0].mxu0
    %v436 = vadd.f32 %v351, %v435
    %v437 = vpop.f32.mrb[0].mxu0
    %v438 = vpop.f32.mrb[0].mxu0
    %v439 = vpop.f32.mrb[0].mxu0
    %440 = vdwg.mxu0
    %vm441 = vcmp.ge.f32.partialorder %v436, 0.0
    %v442 = vmul.f32 %v436, 0.01
    %v443 = vsel %vm441, %v436, %v442
    %v444 = vpack.c.bf16 %v443, %v443
    %v445 = vld [vmem:[#allocation9] sm:$0xf]
    %v446 = vld [vmem:[#allocation9 + $0x4] sm:$0xf]
    %v447 = vld [vmem:[#allocation9 + $0x8] sm:$0xf]
    %v448 = vld [vmem:[#allocation9 + $0xc] sm:$0xf]
    %v449 = vld [vmem:[#allocation9 + $0x10] sm:$0xf]
    %v450 = vld [vmem:[#allocation9 + $0x14] sm:$0xf]
    %v451 = vld [vmem:[#allocation9 + $0x18] sm:$0xf]
    %v452 = vld [vmem:[#allocation9 + $0x1c] sm:$0xf]
    %v453 = vld [vmem:[#allocation9 + $0x20] sm:$0xf]
    %v454 = vld [vmem:[#allocation9 + $0x24] sm:$0xf]
    %v455 = vld [vmem:[#allocation9 + $0x28] sm:$0xf]
    %v456 = vld [vmem:[#allocation9 + $0x2c] sm:$0xf]
    %v457 = vld [vmem:[#allocation9 + $0x30] sm:$0xf]
    %v458 = vld [vmem:[#allocation9 + $0x34] sm:$0xf]
    %v459 = vld [vmem:[#allocation9 + $0x38] sm:$0xf]
    %v460 = vld [vmem:[#allocation9 + $0x3c] sm:$0xf]
    %v461 = vld [vmem:[%s8] sm:$0x1]
    %v463 = vlaneseq
    %v464 = vshrl.u32 %v463, 7
    %v465 = vsub.s32 0, %v464
    %v466 = vrot.slane %v461, %v465
    %v484 = vunpack.c.l.b16 %v445
    %v485 = vunpack.c.l.b16 %v446
    %v486 = vunpack.c.l.b16 %v447
    %v487 = vunpack.c.l.b16 %v448
    %v488 = vunpack.c.l.b16 %v449
    %v489 = vunpack.c.l.b16 %v450
    %v490 = vunpack.c.l.b16 %v451
    %v491 = vunpack.c.l.b16 %v452
    %v492 = vunpack.c.l.b16 %v453
    %v493 = vunpack.c.l.b16 %v454
    %v494 = vunpack.c.l.b16 %v455
    %v495 = vunpack.c.l.b16 %v456
    %v496 = vunpack.c.l.b16 %v457
    %v497 = vunpack.c.l.b16 %v458
    %v498 = vunpack.c.l.b16 %v459
    %v499 = vunpack.c.l.b16 %v460
    %v500 = vpack.c.b16 %v485, %v484
    %v501 = vpack.c.b16 %v487, %v486
    %v502 = vpack.c.b16 %v489, %v488
    %v503 = vpack.c.b16 %v491, %v490
    %v504 = vpack.c.b16 %v493, %v492
    %v505 = vpack.c.b16 %v495, %v494
    %v506 = vpack.c.b16 %v497, %v496
    %v507 = vpack.c.b16 %v499, %v498
    %516 = vmatprep.subr.bf16.mxu0 0
    %517 = vmatpush1.bf16.msra.mxu0 %v500
    %518 = vmatprep.subr.bf16.mxu0 0
    %519 = vmatpush1.bf16.msra.mxu0 %v501
    %520 = vmatprep.subr.bf16.mxu0 0
    %521 = vmatpush1.bf16.msra.mxu0 %v502
    %522 = vmatprep.subr.bf16.mxu0 0
    %523 = vmatpush1.bf16.msra.mxu0 %v503
    %524 = vmatprep.subr.bf16.mxu0 0
    %525 = vmatpush1.bf16.msra.mxu0 %v504
    %526 = vmatprep.subr.bf16.mxu0 0
    %527 = vmatpush1.bf16.msra.mxu0 %v505
    %528 = vmatprep.subr.bf16.mxu0 0
    %529 = vmatpush1.bf16.msra.mxu0 %v506
    %530 = vmatprep.subr.bf16.mxu0 0
    %531 = vmatpush1.bf16.msra.mxu0 %v507
    %532 = vmatprep.subr.bf16.mxu0 0
    %533 = vmatpush1.bf16.msra.mxu0 0
    %534 = vmatprep.subr.bf16.mxu0 0
    %535 = vmatpush1.bf16.msra.mxu0 0
    %536 = vmatprep.subr.bf16.mxu0 0
    %537 = vmatpush1.bf16.msra.mxu0 0
    %538 = vmatprep.subr.bf16.mxu0 0
    %539 = vmatpush1.bf16.msra.mxu0 0
    %540 = vmatprep.subr.bf16.mxu0 0
    %541 = vmatpush1.bf16.msra.mxu0 0
    %542 = vmatprep.subr.bf16.mxu0 0
    %543 = vmatpush1.bf16.msra.mxu0 0
    %544 = vmatprep.subr.bf16.mxu0 0
    %545 = vmatpush1.bf16.msra.mxu0 0
    %546 = vmatprep.subr.bf16.mxu0 0
    %547 = vmatpush1.bf16.msra.mxu0 0
    %548 = vmatprep.mubr.bf16.mxu0 0
    %549 = vmatmul.mubr.bf16.gmra.mrb[0].mxu0 %v444
    %v550 = vpop.f32.mrb[0].mxu0
    %v551 = vadd.f32 %v466, %v550
    %v552 = vpop.f32.mrb[0].mxu0
    %v553 = vpop.f32.mrb[0].mxu0
    %v554 = vpop.f32.mrb[0].mxu0
    %555 = vdwg.mxu0
    %v556 = vpack.c.bf16 %v551, %v551
    %557 = vst [vmem:[%s9] sm:$0xf] %v556
    // Predicated region
    $region58: #{fnn_forward.1} parent=1 // pred_check
      _
    $region59: #{fnn_forward.1} parent=1 // pred_check_branch
      %559 = sbr.rel (0) target = $region61
    $region60: #{fnn_forward.1} parent=1 // pred_region
      _
    $region61: #{fnn_forward.1} parent=1 // pred_fallthru
      _
    // Predicated region
    $region62: #{fnn_forward.1} parent=1 // pred_check
      _
    $region63: #{fnn_forward.1} parent=1 // pred_check_branch
      %561 = sbr.rel (0) target = $region65
    $region64: #{fnn_forward.1} parent=1 // pred_region
      _
    $region65: #{fnn_forward.1} parent=1 // pred_fallthru
      _
    %562 = vsyncpa [#allocation3], 1
    %563 = vsyncpa [#allocation5], 1
    %564 = vsyncpa [#allocation8], 1

</llo_original>
